<compile_context>
chip_gen: v7x
topology: tpu7x:2x2x1
jax: 0.10.0
libtpu: 0.0.40
codegen_flags: <defaults>
</compile_context>

<pallas_src>
import jax
import jax.numpy as jnp
from jax.experimental import pallas as pl
from jax.experimental.pallas import tpu as pltpu


def _round_up(x, m):
    return ((x + m - 1) // m) * m


def _cdiv(a, b):
    return (a + b - 1) // b


def _rpe_kernel(d_ref, w_ref, b_ref, o_ref):
    # d_ref: (TR, 1)  f32 -- flattened distances for this row tile
    # w_ref: (1, TF)  f32 -- Linear weight slice (zero-padded past feats)
    # b_ref: (1, TF)  f32 -- bias slice (zero-padded past feats)
    # o_ref: (TR, TF)     -- output tile; compute f32, cast at the store
    out = d_ref[...] * w_ref[...] + b_ref[...]
    o_ref[...] = out.astype(o_ref.dtype)


def rpe_embeddings(distance_matrix, weight, bias, *, num_heads, embed_dim,
                   tile_rows=4096, tile_feats=512, out_dtype=jnp.float32,
                   vmem_limit_bytes=48 * 1024 * 1024):
    """distance_matrix: (N, N) float
       weight: (E*H, 1) float   (torch nn.Linear layout)
       bias:   (E*H,)   float
       returns (H, N, N, E) in out_dtype (default float32, matching torch)."""
    n = distance_matrix.shape[0]
    feats = embed_dim * num_heads
    rows = n * n

    assert tile_feats % 128 == 0 and tile_rows >= 8

    out_itemsize = jnp.dtype(out_dtype).itemsize
    sub = 8 * (4 // out_itemsize)          # sublane packing: 8 f32, 16 bf16, 32 i8
    vmem_budget = max(vmem_limit_bytes - (8 << 20), 4 << 20)

    def _vmem_need(tr_, tf_):
        # double-buffered out tile + (tr,1) f32 d block (lane-pads to 128) + w/b
        return (2 * tr_ * tf_ * out_itemsize
                + 2 * tr_ * 128 * 4
                + 4 * tf_ * 4)

    # --- feature tile: prefer one contiguous lane-dense block covering all
    #     feats (contiguous output writeback, d column read once); fall back to
    #     tile_feats chunks only if that would blow the VMEM budget. ---
    feats_lane = _round_up(feats, 128)
    if feats_lane <= tile_feats or _vmem_need(512, feats_lane) <= vmem_budget:
        tf = feats_lane
    else:
        tf = tile_feats

    # --- row tile: as large as the budget allows (cap tile_rows); if the whole
    #     problem fits one tile, split into two sublane-aligned halves so a
    #     second TensorCore (v7x megacore) still gets a row block. ---
    tr = max(sub, _round_up(tile_rows, sub))
    while tr > sub and _vmem_need(tr, tf) > vmem_budget:
        tr = max(sub, _round_up(tr // 2, sub))
    if rows <= tr:
        tr = max(sub, _round_up(_cdiv(rows, 2), sub))

    n_row = _cdiv(rows, tr)
    n_feat = _cdiv(feats, tf)

    # Inputs: d stays exact (edge row block is clipped by Pallas); only the tiny
    # weight/bias rows are zero-padded to the feature-tile width.
    d_flat = distance_matrix.reshape(rows, 1).astype(jnp.float32)
    feats_p = n_feat * tf
    w_row = weight.reshape(1, feats).astype(jnp.float32)
    b_row = bias.reshape(1, feats).astype(jnp.float32)
    if feats_p != feats:
        w_row = jnp.pad(w_row, ((0, 0), (0, feats_p - feats)))
        b_row = jnp.pad(b_row, ((0, 0), (0, feats_p - feats)))

    if n_feat == 1:
        # 1-D grid over rows: the only >1 axis is the one megacore shards.
        grid = (n_row,)
        in_specs = [
            pl.BlockSpec((tr, 1), lambda i: (i, 0)),
            pl.BlockSpec((1, tf), lambda i: (0, 0)),
            pl.BlockSpec((1, tf), lambda i: (0, 0)),
        ]
        out_spec = pl.BlockSpec((tr, tf), lambda i: (i, 0))
        dim_sem = ("parallel",)
    else:
        # feats outermost so the tiny w/b blocks stay resident across the row sweep.
        grid = (n_feat, n_row)
        in_specs = [
            pl.BlockSpec((tr, 1), lambda j, i: (i, 0)),
            pl.BlockSpec((1, tf), lambda j, i: (0, j)),
            pl.BlockSpec((1, tf), lambda j, i: (0, j)),
        ]
        out_spec = pl.BlockSpec((tr, tf), lambda j, i: (i, j))
        dim_sem = ("parallel", "parallel")

    out_flat = pl.pallas_call(
        _rpe_kernel,
        out_shape=jax.ShapeDtypeStruct((rows, feats), out_dtype),
        grid_spec=pltpu.PrefetchScalarGridSpec(
            num_scalar_prefetch=0,
            grid=grid,
            in_specs=in_specs,
            out_specs=out_spec,
        ),
        compiler_params=pltpu.CompilerParams(
            dimension_semantics=dim_sem,
            vmem_limit_bytes=vmem_limit_bytes,
        ),
        cost_estimate=pl.CostEstimate(
            flops=2 * rows * feats,
            transcendentals=0,
            bytes_accessed=rows * feats * out_itemsize + rows * 4 + 2 * feats * 4,
        ),
    )(d_flat, w_row, b_row)

    # torch .view(num_heads, N, N, -1) on the (N*N, E*H) buffer == row-major reshape
    return out_flat.reshape(num_heads, n, n, embed_dim)


def _reference(distance_matrix, weight, bias, *, num_heads, embed_dim):
    n = distance_matrix.shape[0]
    return (distance_matrix.reshape(-1, 1).astype(jnp.float32) @ weight.T
            + bias).reshape(num_heads, n, n, embed_dim)


if __name__ == "__main__":
    key = jax.random.PRNGKey(0)
    keys = jax.random.split(key, 6)

    # --- test 1: demo config (N=16, E=32, H=4 -> feats=128; 1-D grid, 2 row
    #     blocks so both v7x TensorCores get work; exact, no edge masking). ---
    embed_dim, num_heads, num_patches = 32, 4, 16
    feats = embed_dim * num_heads
    distance_matrix = jax.random.normal(keys[0], (num_patches, num_patches), jnp.float32)
    weight = jax.random.normal(keys[1], (feats, 1), jnp.float32) * 0.02
    bias = jax.random.normal(keys[2], (feats,), jnp.float32) * 0.02

    out = rpe_embeddings(distance_matrix, weight, bias,
                         num_heads=num_heads, embed_dim=embed_dim)
    out = jax.block_until_ready(out)
    ref = _reference(distance_matrix, weight, bias,
                     num_heads=num_heads, embed_dim=embed_dim)
    assert out.shape == (num_heads, num_patches, num_patches, embed_dim)
    assert jnp.allclose(out, ref, atol=1e-5, rtol=1e-5)

    # --- test 2: awkward sizes exercising ragged row blocks AND ragged feature
    #     lanes with exact out_shape (N=30 -> 900 rows, E=24, H=3 -> feats=72;
    #     forced small row tile -> 4 row blocks, last one masked). ---
    embed_dim2, num_heads2, num_patches2 = 24, 3, 30
    feats2 = embed_dim2 * num_heads2
    dm2 = jax.random.normal(keys[3], (num_patches2, num_patches2), jnp.float32)
    w2 = jax.random.normal(keys[4], (feats2, 1), jnp.float32) * 0.02
    b2 = jax.random.normal(keys[5], (feats2,), jnp.float32) * 0.02

    out2 = rpe_embeddings(dm2, w2, b2, num_heads=num_heads2, embed_dim=embed_dim2,
                          tile_rows=256)
    out2 = jax.block_until_ready(out2)
    ref2 = _reference(dm2, w2, b2, num_heads=num_heads2, embed_dim=embed_dim2)
    assert out2.shape == (num_heads2, num_patches2, num_patches2, embed_dim2)
    assert jnp.allclose(out2, ref2, atol=1e-5, rtol=1e-5)

    # --- test 3: bf16 output path (halves HBM write bytes; f32 compute,
    #     cast at store; row tile rounded to the bf16 packing factor 16). ---
    out3 = rpe_embeddings(distance_matrix, weight, bias,
                          num_heads=num_heads, embed_dim=embed_dim,
                          out_dtype=jnp.bfloat16)
    out3 = jax.block_until_ready(out3)
    assert out3.dtype == jnp.bfloat16
    assert jnp.allclose(out3.astype(jnp.float32), ref, atol=2e-3, rtol=2e-2)

    print("KERNEL_OK")
</pallas_src>

<mosaic_0001>
module attributes {stable_mosaic.version = 11 : i64} {
  func.func @_rpe_kernel(%arg0: i32, %arg1: memref<128x1xf32, #tpu.memory_space<vmem>>, %arg2: memref<1x128xf32, #tpu.memory_space<vmem>>, %arg3: memref<1x128xf32, #tpu.memory_space<vmem>>, %arg4: memref<128x128xf32, #tpu.memory_space<vmem>>) attributes {dimension_semantics = [#tpu.dimension_semantics<parallel>], iteration_bounds = array<i64: 2>, scalar_prefetch = 0 : i64, scratch_operands = 0 : i64, tpu.core_type = #tpu.core_type<tc>, window_params = [{transform_indices = @transform_0, window_bounds = array<i64: 128, 1>}, {pipeline_mode = #tpu.pipeline_mode<synchronous>, transform_indices = @transform_1, window_bounds = array<i64: 1, 128>}, {pipeline_mode = #tpu.pipeline_mode<synchronous>, transform_indices = @transform_2, window_bounds = array<i64: 1, 128>}, {transform_indices = @transform_3, window_bounds = array<i64: 128, 128>}]} {
    %c0 = arith.constant 0 : index
    %c0_0 = arith.constant 0 : index
    %0 = vector.load %arg1[%c0, %c0_0] : memref<128x1xf32, #tpu.memory_space<vmem>>, vector<128x1xf32>
    %c0_1 = arith.constant 0 : index
    %c0_2 = arith.constant 0 : index
    %1 = vector.load %arg2[%c0_1, %c0_2] : memref<1x128xf32, #tpu.memory_space<vmem>>, vector<1x128xf32>
    %2 = vector.broadcast %0 : vector<128x1xf32> to vector<128x128xf32>
    %3 = vector.broadcast %1 : vector<1x128xf32> to vector<128x128xf32>
    %4 = arith.mulf %2, %3 : vector<128x128xf32>
    %c0_3 = arith.constant 0 : index
    %c0_4 = arith.constant 0 : index
    %5 = vector.load %arg3[%c0_3, %c0_4] : memref<1x128xf32, #tpu.memory_space<vmem>>, vector<1x128xf32>
    %6 = vector.broadcast %5 : vector<1x128xf32> to vector<128x128xf32>
    %7 = arith.addf %4, %6 : vector<128x128xf32>
    %c0_5 = arith.constant 0 : index
    %c0_6 = arith.constant 0 : index
    %8 = vector.load %arg4[%c0_5, %c0_6] : memref<128x128xf32, #tpu.memory_space<vmem>>, vector<128x128xf32>
    tpu.vector_store %arg4[%c0_5, %c0_6], %7 {strides = array<i32>} : memref<128x128xf32, #tpu.memory_space<vmem>>, vector<128x128xf32>,
    return
  }
  func.func @transform_0(%arg0: i32) -> (i32, i32) {
    %c0_i32 = arith.constant 0 : i32
    %c0_i32_0 = arith.constant 0 : i32
    return %arg0, %c0_i32 : i32, i32
  }
  func.func @transform_1(%arg0: i32) -> (i32, i32) {
    %c0_i32 = arith.constant 0 : i32
    %c0_i32_0 = arith.constant 0 : i32
    %c0_i32_1 = arith.constant 0 : i32
    return %c0_i32, %c0_i32_0 : i32, i32
  }
  func.func @transform_2(%arg0: i32) -> (i32, i32) {
    %c0_i32 = arith.constant 0 : i32
    %c0_i32_0 = arith.constant 0 : i32
    %c0_i32_1 = arith.constant 0 : i32
    return %c0_i32, %c0_i32_0 : i32, i32
  }
  func.func @transform_3(%arg0: i32) -> (i32, i32) {
    %c0_i32 = arith.constant 0 : i32
    %c0_i32_0 = arith.constant 0 : i32
    return %arg0, %c0_i32 : i32, i32
  }
}

</mosaic_0001>

<llo_original>
// kernel: tpu_custom_call.1
$region0: #{tpu_custom_call.1}
  #allocation0 [shape = 'u32[]', space=smem, size = 0x4, offset = 0x4, fixed_abs, tag = 'smem constant byte address 0x4 - core index']
  #allocation1 [shape = 'u32[144,128]{1,0:T(1,128)}', space=vmem, size = 0x12000, scoped, tag = 'internal scratch']
  %s0 = inlined_call_operand.vmem [shape: f32[256,1], index: 0, kind: input, shape index: {}]
  %s1 = inlined_call_operand.vmem [shape: f32[1,128], index: 1, kind: input, shape index: {}]
  %s2 = inlined_call_operand.vmem [shape: f32[1,128], index: 2, kind: input, shape index: {}]
  %s3 = inlined_call_operand.hbm [shape: f32[256,128], index: 3, kind: output, shape index: {}]
  %s4 = sld [smem:[#allocation0]]
  $region45: #{tpu_custom_call.1} parent=0
    _
  %s6 = ssub.s32 1, %s4
  %s7 = scalar_select 0, %s6, %s4
  $region1: #{tpu_custom_call.1} parent=0
    #allocation2 [shape = 'u8[131072]{0}', space=vmem, size = 0x20000, scoped, tag = 'output window, operand 0']
    #allocation3 [shape = 's32[2]{0}', space=sflag, size = 0x8, scoped, tag = 'scoped memory for tpu_custom_call.1']
    %8 = vsyncpa [#allocation3], 0
    %s9 = scalar_lea.sflag [#allocation3], 1
    %10 = vsyncpa %s9, 0
    loop: start=0, step=1, limit=4
    $region2: #{tpu_custom_call.1} parent=1 // loop_pre_header
      _
    $region3: #{tpu_custom_call.1} parent=1 // loop_header
      %s12 = sphi 0, %s16
      %p13 = scmp.ge.s32.totalorder %s12, 4
      %s22 = sphi 0, %s24
      %s25 = sphi 0, %s22
      %s26 = sphi 0, %s25
      %s42 = sphi 0, %s26
      %s46 = sphi 0, %s46
      %s48 = sphi 0, %s46
      %s49 = sphi 0, %s48
      %s63 = sphi 0, %s49
      %s67 = sphi 0, %s67
      %s69 = sphi 0, %s67
      %s70 = sphi 0, %s69
      %s84 = sphi 0, %s70
      %s90 = sphi 0, %s92
      %s93 = sphi 0, %s90
      %s94 = sphi 0, %s93
      %s110 = sphi 0, %s94
    $region4: #{tpu_custom_call.1} parent=1 // loop_header_branch
      %15 = sbr.rel (%p13) target = $region8
    $region5: #{tpu_custom_call.1} parent=1 // loop_body
      %s17 = ssub.s32 %s12, 1
      %s18 = ssub.s32 %s12, 2
      %s19 = sadd.s32 %s12, 1
      %s20 = ssub.s32 %s12, %s19
      %p21 = scmp.eq.s32.totalorder %s20, 0
      %s23 = sadd.s32 %s22, 1
      %s24 = scalar_select %p21, %s22, %s23
      %p27 = pneg %p21
      %p28 = scmp.eq.s32.totalorder %s12, 1
      %p29 = por %p27, %p28
      %p30 = scmp.ne.s32.totalorder %s22, %s25
      %p31 = scmp.eq.s32.totalorder %s12, 0
      %p32 = por %p30, %p31
      %p33 = scmp.ne.s32.totalorder %s22, %s25
      %p34 = scmp.eq.s32.totalorder %s17, 1
      %p35 = por %p33, %p34
      %p36 = scmp.ne.s32.totalorder %s25, %s26
      %p37 = scmp.eq.s32.totalorder %s17, 0
      %p38 = por %p36, %p37
      %p39 = scmp.ne.s32.totalorder %s25, %s26
      %p40 = scmp.eq.s32.totalorder %s18, 1
      %p41 = por %p39, %p40
      %p43 = scmp.ne.s32.totalorder %s26, %s42
      %p44 = scmp.eq.s32.totalorder %s18, 0
      %p45 = por %p43, %p44
      %s47 = sadd.s32 %s46, 1
      %p50 = scmp.eq.s32.totalorder %s12, 1
      %p51 = scmp.ne.s32.totalorder %s46, %s48
      %p52 = scmp.eq.s32.totalorder %s12, 0
      %p53 = por %p51, %p52
      %p54 = scmp.ne.s32.totalorder %s46, %s48
      %p55 = scmp.eq.s32.totalorder %s17, 1
      %p56 = por %p54, %p55
      %p57 = scmp.ne.s32.totalorder %s48, %s49
      %p58 = scmp.eq.s32.totalorder %s17, 0
      %p59 = por %p57, %p58
      %p60 = scmp.ne.s32.totalorder %s48, %s49
      %p61 = scmp.eq.s32.totalorder %s18, 1
      %p62 = por %p60, %p61
      %p64 = scmp.ne.s32.totalorder %s49, %s63
      %p65 = scmp.eq.s32.totalorder %s18, 0
      %p66 = por %p64, %p65
      %s68 = sadd.s32 %s67, 1
      %p71 = scmp.eq.s32.totalorder %s12, 1
      %p72 = scmp.ne.s32.totalorder %s67, %s69
      %p73 = scmp.eq.s32.totalorder %s12, 0
      %p74 = por %p72, %p73
      %p75 = scmp.ne.s32.totalorder %s67, %s69
      %p76 = scmp.eq.s32.totalorder %s17, 1
      %p77 = por %p75, %p76
      %p78 = scmp.ne.s32.totalorder %s69, %s70
      %p79 = scmp.eq.s32.totalorder %s17, 0
      %p80 = por %p78, %p79
      %p81 = scmp.ne.s32.totalorder %s69, %s70
      %p82 = scmp.eq.s32.totalorder %s18, 1
      %p83 = por %p81, %p82
      %p85 = scmp.ne.s32.totalorder %s70, %s84
      %p86 = scmp.eq.s32.totalorder %s18, 0
      %p87 = por %p85, %p86
      %s88 = ssub.s32 %s12, %s19
      %p89 = scmp.eq.s32.totalorder %s88, 0
      %s91 = sadd.s32 %s90, 1
      %s92 = scalar_select %p89, %s90, %s91
      %p95 = pneg %p89
      %p96 = scmp.eq.s32.totalorder %s12, 1
      %p97 = por %p95, %p96
      %p98 = scmp.ne.s32.totalorder %s90, %s93
      %p99 = scmp.eq.s32.totalorder %s12, 0
      %p100 = por %p98, %p99
      %p101 = scmp.ne.s32.totalorder %s90, %s93
      %p102 = scmp.eq.s32.totalorder %s17, 1
      %p103 = por %p101, %p102
      %p104 = scmp.ne.s32.totalorder %s93, %s94
      %p105 = scmp.eq.s32.totalorder %s17, 0
      %p106 = por %p104, %p105
      %p107 = scmp.ne.s32.totalorder %s93, %s94
      %p108 = scmp.eq.s32.totalorder %s18, 1
      %p109 = por %p107, %p108
      %p111 = scmp.ne.s32.totalorder %s94, %s110
      %p112 = scmp.eq.s32.totalorder %s18, 0
      %p113 = por %p111, %p112
      %p114 = scmp.le.s32.totalorder 1, %s12
      %p115 = scmp.lt.s32.totalorder %s12, 3
      %p116 = pnand %p114, %p115
      %p117 = pneg %p116
      // Predicated region
      $region9: #{tpu_custom_call.1} parent=5 // pred_check
        _
      $region10: #{tpu_custom_call.1} parent=5 // pred_check_branch
        %119 = sbr.rel (%p116) target = $region12
      $region11: #{tpu_custom_call.1} parent=5 // pred_region
        %s120 = ssub.s32 %s12, 1
        // Predicated region
        $region13: #{tpu_custom_call.1} parent=11 // pred_check
          %p121 = pneg %p59
        $region14: #{tpu_custom_call.1} parent=11 // pred_check_branch
          %123 = sbr.rel (%p121) target = $region16
        $region15: #{tpu_custom_call.1} parent=11 // pred_region
          _
        $region16: #{tpu_custom_call.1} parent=11 // pred_fallthru
          _
        // Predicated region
        $region17: #{tpu_custom_call.1} parent=11 // pred_check
          %p124 = pneg %p80
        $region18: #{tpu_custom_call.1} parent=11 // pred_check_branch
          %126 = sbr.rel (%p124) target = $region20
        $region19: #{tpu_custom_call.1} parent=11 // pred_region
          _
        $region20: #{tpu_custom_call.1} parent=11 // pred_fallthru
          _
      $region12: #{tpu_custom_call.1} parent=5 // pred_fallthru
        _
      %p127 = scmp.lt.s32.totalorder %s12, 2
      // Predicated region
      $region21: #{tpu_custom_call.1} parent=5 // pred_check
        %p128 = pneg %p127
      $region22: #{tpu_custom_call.1} parent=5 // pred_check_branch
        %130 = sbr.rel (%p128) target = $region24
      $region23: #{tpu_custom_call.1} parent=5 // pred_region
        // Predicated region
        $region25: #{tpu_custom_call.1} parent=23 // pred_check
          %p131 = pneg %p32
        $region26: #{tpu_custom_call.1} parent=23 // pred_check_branch
          %133 = sbr.rel (%p131) target = $region28
        $region27: #{tpu_custom_call.1} parent=23 // pred_region
          %s134 = smul.u32 16, %s12
          %p135 = scmp.lt.s32.totalorder %s134, 31
          %s136 = scalar_select %p135, %s134, 31
          %s137 = smul.addr %s136, 8
          %s138 = scalar_lea.vmem %s0, %s137
          %s139 = smul.u32 16, %s12
        $region28: #{tpu_custom_call.1} parent=23 // pred_fallthru
          _
      $region24: #{tpu_custom_call.1} parent=5 // pred_fallthru
        _
      %p140 = scmp.le.s32.totalorder 1, %s12
      %p141 = scmp.lt.s32.totalorder %s12, 3
      %p142 = pnand %p140, %p141
      %p143 = pneg %p142
      // Predicated region
      $region29: #{tpu_custom_call.1} parent=5 // pred_check
        _
      $region30: #{tpu_custom_call.1} parent=5 // pred_check_branch
        %145 = sbr.rel (%p142) target = $region32
      $region31: #{tpu_custom_call.1} parent=5 // pred_region
        %s146 = ssub.s32 %s12, 1
        %s147 = smul.u32 16, %s17
        %p148 = scmp.lt.s32.totalorder %s147, 31
        %s149 = scalar_select %p148, %s147, 31
        %s150 = smul.addr %s149, 8
        %s151 = scalar_lea.vmem %s0, %s150
        %p152 = pneg %p38
        %p153 = pneg %p35
        %p154 = pneg %p59
        %p155 = pneg %p56
        %p156 = pneg %p80
        %p157 = pneg %p77
        %p158 = pneg %p106
        %p159 = pneg %p103
        %s160 = sand.u32 %s93, 1
        %s161 = scalar_lea.sflag [#allocation3], %s160
        %s162 = sand.u32 %s93, 1
        %s163 = smul.addr %s162, 128
        %s164 = scalar_lea.vmem [#allocation2], %s163
        %s165 = smul.u32 16, %s17
        %p166 = scmp.lt.s32.totalorder %s165, 31
        %s167 = scalar_select %p166, %s165, 31
        %s168 = smul.addr %s167, 8
        %s169 = scalar_lea.vmem %s0, %s168
        %s170 = smul.u32 16, %s17
        %s171 = smul.u32 16, %s17
        %v172 = vld [vmem:[%s169] sm:$0xff]
        %v173 = vld [vmem:[%s169 + $0x8] sm:$0xff]
        %v174 = vld [vmem:[%s169 + $0x10] sm:$0xff]
        %v175 = vld [vmem:[%s169 + $0x18] sm:$0xff]
        %v176 = vld [vmem:[%s169 + $0x20] sm:$0xff]
        %v177 = vld [vmem:[%s169 + $0x28] sm:$0xff]
        %v178 = vld [vmem:[%s169 + $0x30] sm:$0xff]
        %v179 = vld [vmem:[%s169 + $0x38] sm:$0xff]
        %v180 = vld [vmem:[%s169 + $0x40] sm:$0xff]
        %v181 = vld [vmem:[%s169 + $0x48] sm:$0xff]
        %v182 = vld [vmem:[%s169 + $0x50] sm:$0xff]
        %v183 = vld [vmem:[%s169 + $0x58] sm:$0xff]
        %v184 = vld [vmem:[%s169 + $0x60] sm:$0xff]
        %v185 = vld [vmem:[%s169 + $0x68] sm:$0xff]
        %v186 = vld [vmem:[%s169 + $0x70] sm:$0xff]
        %v187 = vld [vmem:[%s169 + $0x78] sm:$0xff]
        %v188 = vld [vmem:[%s1] sm:$0x1]
        %190 = vset.pattern.permute.xlu0 0
        %191 = vperm.xlu0 %190, %v172
        %v192 = vpop.permute.xlu0 %191
        %195 = vset.pattern.permute.xlu0 0
        %196 = vperm.xlu0 %195, %v173
        %v197 = vpop.permute.xlu0 %196
        %200 = vset.pattern.permute.xlu0 0
        %201 = vperm.xlu0 %200, %v174
        %v202 = vpop.permute.xlu0 %201
        %205 = vset.pattern.permute.xlu0 0
        %206 = vperm.xlu0 %205, %v175
        %v207 = vpop.permute.xlu0 %206
        %210 = vset.pattern.permute.xlu0 0
        %211 = vperm.xlu0 %210, %v176
        %v212 = vpop.permute.xlu0 %211
        %215 = vset.pattern.permute.xlu0 0
        %216 = vperm.xlu0 %215, %v177
        %v217 = vpop.permute.xlu0 %216
        %220 = vset.pattern.permute.xlu0 0
        %221 = vperm.xlu0 %220, %v178
        %v222 = vpop.permute.xlu0 %221
        %225 = vset.pattern.permute.xlu0 0
        %226 = vperm.xlu0 %225, %v179
        %v227 = vpop.permute.xlu0 %226
        %230 = vset.pattern.permute.xlu0 0
        %231 = vperm.xlu0 %230, %v180
        %v232 = vpop.permute.xlu0 %231
        %235 = vset.pattern.permute.xlu0 0
        %236 = vperm.xlu0 %235, %v181
        %v237 = vpop.permute.xlu0 %236
        %240 = vset.pattern.permute.xlu0 0
        %241 = vperm.xlu0 %240, %v182
        %v242 = vpop.permute.xlu0 %241
        %245 = vset.pattern.permute.xlu0 0
        %246 = vperm.xlu0 %245, %v183
        %v247 = vpop.permute.xlu0 %246
        %250 = vset.pattern.permute.xlu0 0
        %251 = vperm.xlu0 %250, %v184
        %v252 = vpop.permute.xlu0 %251
        %255 = vset.pattern.permute.xlu0 0
        %256 = vperm.xlu0 %255, %v185
        %v257 = vpop.permute.xlu0 %256
        %260 = vset.pattern.permute.xlu0 0
        %261 = vperm.xlu0 %260, %v186
        %v262 = vpop.permute.xlu0 %261
        %265 = vset.pattern.permute.xlu0 0
        %266 = vperm.xlu0 %265, %v187
        %v267 = vpop.permute.xlu0 %266
        %v270 = vlaneseq
        %v271 = vshrl.u32 %v270, 7
        %v272 = vsub.s32 0, %v271
        %v273 = vrot.slane %v188, %v272
        %v275 = vmul.f32 %v192, %v273
        %v276 = vmul.f32 %v197, %v273
        %v277 = vmul.f32 %v202, %v273
        %v278 = vmul.f32 %v207, %v273
        %v279 = vmul.f32 %v212, %v273
        %v280 = vmul.f32 %v217, %v273
        %v281 = vmul.f32 %v222, %v273
        %v282 = vmul.f32 %v227, %v273
        %v283 = vmul.f32 %v232, %v273
        %v284 = vmul.f32 %v237, %v273
        %v285 = vmul.f32 %v242, %v273
        %v286 = vmul.f32 %v247, %v273
        %v287 = vmul.f32 %v252, %v273
        %v288 = vmul.f32 %v257, %v273
        %v289 = vmul.f32 %v262, %v273
        %v290 = vmul.f32 %v267, %v273
        %v291 = vld [vmem:[%s2] sm:$0x1]
        %v293 = vlaneseq
        %v294 = vshrl.u32 %v293, 7
        %v295 = vsub.s32 0, %v294
        %v296 = vrot.slane %v291, %v295
        %v298 = vadd.f32 %v275, %v296
        %v299 = vadd.f32 %v276, %v296
        %v300 = vadd.f32 %v277, %v296
        %v301 = vadd.f32 %v278, %v296
        %v302 = vadd.f32 %v279, %v296
        %v303 = vadd.f32 %v280, %v296
        %v304 = vadd.f32 %v281, %v296
        %v305 = vadd.f32 %v282, %v296
        %v306 = vadd.f32 %v283, %v296
        %v307 = vadd.f32 %v284, %v296
        %v308 = vadd.f32 %v285, %v296
        %v309 = vadd.f32 %v286, %v296
        %v310 = vadd.f32 %v287, %v296
        %v311 = vadd.f32 %v288, %v296
        %v312 = vadd.f32 %v289, %v296
        %v313 = vadd.f32 %v290, %v296
        %314 = vst [vmem:[%s164] sm:$0xff] %v298
        %315 = vst [vmem:[%s164 + $0x8] sm:$0xff] %v299
        %316 = vst [vmem:[%s164 + $0x10] sm:$0xff] %v300
        %317 = vst [vmem:[%s164 + $0x18] sm:$0xff] %v301
        %318 = vst [vmem:[%s164 + $0x20] sm:$0xff] %v302
        %319 = vst [vmem:[%s164 + $0x28] sm:$0xff] %v303
        %320 = vst [vmem:[%s164 + $0x30] sm:$0xff] %v304
        %321 = vst [vmem:[%s164 + $0x38] sm:$0xff] %v305
        %322 = vst [vmem:[%s164 + $0x40] sm:$0xff] %v306
        %323 = vst [vmem:[%s164 + $0x48] sm:$0xff] %v307
        %324 = vst [vmem:[%s164 + $0x50] sm:$0xff] %v308
        %325 = vst [vmem:[%s164 + $0x58] sm:$0xff] %v309
        %326 = vst [vmem:[%s164 + $0x60] sm:$0xff] %v310
        %327 = vst [vmem:[%s164 + $0x68] sm:$0xff] %v311
        %328 = vst [vmem:[%s164 + $0x70] sm:$0xff] %v312
        %329 = vst [vmem:[%s164 + $0x78] sm:$0xff] %v313
        %s330 = sand.u32 %s93, 1
        %s331 = scalar_lea.sflag [#allocation3], %s330
        %s332 = sand.u32 %s93, 1
        %s333 = smul.addr %s332, 128
        %s334 = scalar_lea.vmem [#allocation2], %s333
        // Predicated region
        $region33: #{tpu_custom_call.1} parent=31 // pred_check
          %p335 = pneg %p103
        $region34: #{tpu_custom_call.1} parent=31 // pred_check_branch
          %337 = sbr.rel (%p335) target = $region36
        $region35: #{tpu_custom_call.1} parent=31 // pred_region
          %s338 = smul.u32 16, %s17
          %s340 = ssub.s32 2048, 2048
          %341 = vsyncadd %s331, %s340
          %s342 = smul.addr %s338, 128
          %s343 = scalar_lea.hbm %s3, %s342
          %s344 = sshll.u32 %s334, 4
          %s345 = int_to_ptr.vmem [resolvable:$true] %s344
          %350 = dma.vmem_to_hbm [thread:$0]  %s345, 2048, %s343, %s331, 128, 128, 8
        $region36: #{tpu_custom_call.1} parent=31 // pred_fallthru
          _
      $region32: #{tpu_custom_call.1} parent=5 // pred_fallthru
        _
      %p351 = scmp.le.s32.totalorder 2, %s12
      // Predicated region
      $region37: #{tpu_custom_call.1} parent=5 // pred_check
        %p352 = pneg %p351
      $region38: #{tpu_custom_call.1} parent=5 // pred_check_branch
        %354 = sbr.rel (%p352) target = $region40
      $region39: #{tpu_custom_call.1} parent=5 // pred_region
        %s355 = ssub.s32 %s12, 2
        // Predicated region
        $region41: #{tpu_custom_call.1} parent=39 // pred_check
          %p356 = pneg %p109
        $region42: #{tpu_custom_call.1} parent=39 // pred_check_branch
          %358 = sbr.rel (%p356) target = $region44
        $region43: #{tpu_custom_call.1} parent=39 // pred_region
          %s359 = sand.u32 %s94, 1
          %s360 = scalar_lea.sflag [#allocation3], %s359
          %s361 = sand.u32 %s94, 1
          %s362 = smul.addr %s361, 128
          %s363 = scalar_lea.vmem [#allocation2], %s362
          %364 = dma.done %s360, 2048
        $region44: #{tpu_custom_call.1} parent=39 // pred_fallthru
          _
      $region40: #{tpu_custom_call.1} parent=5 // pred_fallthru
        _
    $region6: #{tpu_custom_call.1} parent=1 // loop_footer
      %s16 = sadd.s32 1, %s12
    $region7: #{tpu_custom_call.1} parent=1 // loop_footer_branch
      %11 = sbr.rel target = $region3
    $region8: #{tpu_custom_call.1} parent=1 // loop_exit
      _
    %365 = vsyncpa [#allocation3], 1
    %s366 = scalar_lea.sflag [#allocation3], 1
    %367 = vsyncpa %s366, 1

</llo_original>
